<compile_context>
chip_gen: v7x
topology: tpu7x:2x2x1
jax: 0.10.0
libtpu: 0.0.40
codegen_flags: <defaults>
</compile_context>

<pallas_src>
import functools

import jax
import jax.numpy as jnp
from jax.experimental import pallas as pl
from jax.experimental.pallas import tpu as pltpu


def _round_up(x: int, m: int) -> int:
    return (x + m - 1) // m * m


def _iou_partial_kernel(p_ref, t_ref, o_ref, pt_acc, p_acc, t_acc, *,
                        tn, n_valid, nhalf, may_mask):
    # Grid: (g = core split, b = batch, n = lane-tile within this core's range)
    g = pl.program_id(0)
    b = pl.program_id(1)
    n = pl.program_id(2)
    nb = pl.num_programs(1)
    nn = pl.num_programs(2)

    @pl.when((b == 0) & (n == 0))
    def _init():
        pt_acc[...] = jnp.zeros_like(pt_acc)
        p_acc[...] = jnp.zeros_like(p_acc)
        t_acc[...] = jnp.zeros_like(t_acc)

    # p_ref / t_ref: (Cp, TN) tile (batch dim squeezed by the BlockSpec).
    p = p_ref[...]
    t = t_ref[...]

    def accumulate(p32, t32):
        pt_acc[...] += jnp.sum(p32 * t32, axis=1, keepdims=True)   # (Cp, 1)
        p_acc[...] += jnp.sum(p32, axis=1, keepdims=True)
        t_acc[...] += jnp.sum(t32, axis=1, keepdims=True)

    if may_mask:
        # Unclamped global lane-block index; the index_map clamps the DMA
        # source, here we only decide how many lanes are real data.
        ng = g * nhalf + n
        remaining = n_valid - ng * tn          # may be <= 0 for padded blocks
        needs_mask = remaining < tn

        @pl.when(jnp.logical_not(needs_mask))
        def _full_tile():                      # hot path: no mask VALU work
            accumulate(p.astype(jnp.float32), t.astype(jnp.float32))

        @pl.when(needs_mask)
        def _ragged_tile():                    # tail / duplicated block only
            lane = jax.lax.broadcasted_iota(jnp.int32, p.shape, 1)
            valid = lane < remaining
            accumulate(jnp.where(valid, p.astype(jnp.float32), 0.0),
                       jnp.where(valid, t.astype(jnp.float32), 0.0))
    else:
        accumulate(p.astype(jnp.float32), t.astype(jnp.float32))

    @pl.when((b == nb - 1) & (n == nn - 1))
    def _finalize():
        # Raw per-core partials: columns are [sum(p*t), sum(p), sum(t)].
        o_ref[:, 0:1] = pt_acc[...]
        o_ref[:, 1:2] = p_acc[...]
        o_ref[:, 2:3] = t_acc[...]


def iou_metric(prd, tgt, eps: float = 1e-6, reduction: str = "none",
               target_tile_bytes: int = 4 * 1024 * 1024):
    """prd, tgt: (B, C, H, W). Returns (C,) float32 (or scalar for mean/sum)."""
    assert prd.shape == tgt.shape
    B, C, H, W = prd.shape
    n_hw = H * W
    itemsize = jnp.dtype(prd.dtype).itemsize

    # Sublane packing of the input dtype (rows per physical (packing,128) tile).
    packing = max(8, 32 // itemsize)           # f32: 8, bf16: 16, i8: 32

    # Sublane fold: (B, C, H*W) -> (B, C*k, H*W/k), k | H*W, k <= packing//C.
    desired = max(1, packing // C)
    k = 1
    for cand in range(min(desired, n_hw), 0, -1):
        if n_hw % cand == 0:
            k = cand
            break
    Cp = C * k
    n_f = n_hw // k

    p3 = prd.reshape(B, Cp, n_f)               # free reshape (contiguous view)
    t3 = tgt.reshape(B, Cp, n_f)

    # Padding-aware lane-tile sizing: a (Cp, tn) VMEM tile is physically
    # padded to (round_up(Cp, packing), tn).
    cp_pad = _round_up(Cp, packing)
    tn_cap = max(128, (target_tile_bytes // (cp_pad * itemsize)) // 128 * 128)
    tn = min(tn_cap, _round_up(n_f, 128))
    num_n = pl.cdiv(n_f, tn)

    # Split lane blocks across (up to) two TensorCores (v7x); harmless
    # sequential extra axis on single-core v5e/v6e.
    G = 2 if num_n >= 2 else 1
    nhalf = pl.cdiv(num_n, G)
    may_mask = (n_f % tn != 0) or (G * nhalf != num_n)

    kernel = functools.partial(_iou_partial_kernel, tn=tn, n_valid=n_f,
                               nhalf=nhalf, may_mask=may_mask)

    def in_map(g, b, n):
        # Clamp duplicated blocks (odd split) onto the last valid block; the
        # kernel fully masks their contribution.
        return (b, 0, jnp.minimum(g * nhalf + n, num_n - 1))

    total = B * C * n_hw
    cost = pl.CostEstimate(
        flops=4 * total,                       # mul + 3 accumulating adds
        transcendentals=0,
        bytes_accessed=2 * total * itemsize + G * Cp * 3 * 4,
    )

    # Explicit VMEM budget from the *padded* double-buffered footprint.
    in_buf = cp_pad * tn * itemsize
    footprint = 2 * 2 * in_buf + 8 * cp_pad * 4 * 4   # 2 in x 2 buf + out/scratch
    vmem_limit = int(min(60 * 1024 * 1024,
                         max(32 * 1024 * 1024, footprint + (8 << 20))))

    partials = pl.pallas_call(
        kernel,
        out_shape=jax.ShapeDtypeStruct((G, Cp, 3), jnp.float32),
        grid_spec=pltpu.PrefetchScalarGridSpec(
            num_scalar_prefetch=0,
            grid=(G, B, nhalf),
            in_specs=[
                pl.BlockSpec((None, Cp, tn), in_map),
                pl.BlockSpec((None, Cp, tn), in_map),
            ],
            out_specs=pl.BlockSpec((None, Cp, 3), lambda g, b, n: (g, 0, 0)),
            scratch_shapes=[
                pltpu.VMEM((Cp, 1), jnp.float32),   # sum(p * t)
                pltpu.VMEM((Cp, 1), jnp.float32),   # sum(p)
                pltpu.VMEM((Cp, 1), jnp.float32),   # sum(t)
            ],
        ),
        compiler_params=pltpu.CompilerParams(
            dimension_semantics=("parallel", "arbitrary", "arbitrary"),
            vmem_limit_bytes=vmem_limit,
        ),
        cost_estimate=cost,
    )(p3, t3)

    # Tiny wrapper glue: combine per-core partials, un-fold the sublane fold,
    # then eps + divide (and optional mean/sum) on a (C,)-sized tensor.
    sums = partials.sum(axis=0).reshape(C, k, 3).sum(axis=1)   # (C, 3)
    intersect = sums[:, 0] + eps
    union = sums[:, 1] + sums[:, 2] + eps
    iou = intersect / union
    if reduction == "mean":
        return jnp.mean(iou)
    if reduction == "sum":
        return jnp.sum(iou)
    return iou


def _reference(prd, tgt, eps=1e-6, reduction="none"):
    # Pure-JAX reference mirroring the PyTorch loop.
    B, C, H, W = prd.shape
    scores = []
    for c in range(C):
        p = prd[:, c].reshape(-1).astype(jnp.float32)
        t = tgt[:, c].reshape(-1).astype(jnp.float32)
        intersect = jnp.dot(p, t) + eps
        union = jnp.sum(p) + jnp.sum(t) + eps
        scores.append(intersect / union)
    out = jnp.stack(scores).astype(jnp.float32)
    if reduction == "mean":
        return out.mean()
    if reduction == "sum":
        return out.sum()
    return out


if __name__ == "__main__":
    key = jax.random.PRNGKey(0)
    k1, k2 = jax.random.split(key)
    B, C, H, W = 2, 4, 16, 16
    # Predictions in [0,1] (e.g. sigmoid outputs), targets binary masks.
    prd = jax.random.uniform(k1, (B, C, H, W), dtype=jnp.float32)
    tgt = (jax.random.uniform(k2, (B, C, H, W), dtype=jnp.float32) > 0.5).astype(
        jnp.float32
    )

    out = jax.block_until_ready(iou_metric(prd, tgt, reduction="none"))
    ref = _reference(prd, tgt, reduction="none")
    assert out.shape == (C,)
    assert jnp.allclose(out, ref, rtol=1e-5, atol=1e-6), (out, ref)

    # Tail-masking path (H*W not a multiple of 128) and "mean" reduction.
    B2, C2, H2, W2 = 2, 4, 16, 13
    k3, k4 = jax.random.split(jax.random.PRNGKey(1))
    prd2 = jax.random.uniform(k3, (B2, C2, H2, W2), dtype=jnp.float32)
    tgt2 = (jax.random.uniform(k4, (B2, C2, H2, W2)) > 0.5).astype(jnp.float32)
    out2 = jax.block_until_ready(iou_metric(prd2, tgt2, reduction="mean"))
    ref2 = _reference(prd2, tgt2, reduction="mean")
    assert jnp.allclose(out2, ref2, rtol=1e-5, atol=1e-6), (out2, ref2)

    # Multi-tile path: odd number of lane blocks -> two-way core split with a
    # clamped duplicate block + ragged tail, non-power-of-2 channel fold.
    B3, C3, H3, W3 = 1, 3, 64, 40
    k5, k6 = jax.random.split(jax.random.PRNGKey(2))
    prd3 = jax.random.uniform(k5, (B3, C3, H3, W3), dtype=jnp.float32)
    tgt3 = (jax.random.uniform(k6, (B3, C3, H3, W3)) > 0.5).astype(jnp.float32)
    out3 = jax.block_until_ready(
        iou_metric(prd3, tgt3, reduction="sum", target_tile_bytes=16 * 1024))
    ref3 = _reference(prd3, tgt3, reduction="sum")
    assert jnp.allclose(out3, ref3, rtol=1e-5, atol=1e-6), (out3, ref3)

    print("KERNEL_OK")
</pallas_src>

<mosaic_0001>
module attributes {stable_mosaic.version = 11 : i64} {
  func.func @_iou_partial_kernel(%arg0: i32, %arg1: i32, %arg2: i32, %arg3: memref<1x8x128xf32, #tpu.memory_space<vmem>>, %arg4: memref<1x8x128xf32, #tpu.memory_space<vmem>>, %arg5: memref<1x8x3xf32, #tpu.memory_space<vmem>>, %arg6: memref<8x1xf32, #tpu.memory_space<vmem>>, %arg7: memref<8x1xf32, #tpu.memory_space<vmem>>, %arg8: memref<8x1xf32, #tpu.memory_space<vmem>>) attributes {dimension_semantics = [#tpu.dimension_semantics<parallel>, #tpu.dimension_semantics<arbitrary>, #tpu.dimension_semantics<arbitrary>], iteration_bounds = array<i64: 1, 2, 1>, scalar_prefetch = 0 : i64, scratch_operands = 3 : i64, tpu.core_type = #tpu.core_type<tc>, window_params = [{transform_indices = @transform_0, window_bounds = array<i64: 1, 8, 128>}, {transform_indices = @transform_1, window_bounds = array<i64: 1, 8, 128>}, {transform_indices = @transform_2, window_bounds = array<i64: 1, 8, 3>}]} {
    %c0_i32 = arith.constant 0 : i32
    %0 = arith.cmpi eq, %arg1, %c0_i32 : i32
    %c0_i32_0 = arith.constant 0 : i32
    %1 = arith.cmpi eq, %arg2, %c0_i32_0 : i32
    %2 = arith.andi %0, %1 : i1
    %3 = arith.extui %2 : i1 to i32
    %c0_i32_1 = arith.constant 0 : i32
    %4 = arith.cmpi ne, %3, %c0_i32_1 : i32
    scf.if %4 {
      %cst_23 = arith.constant 0.000000e+00 : f32
      %30 = vector.broadcast %cst_23 : f32 to vector<8x1xf32>
      %c0_24 = arith.constant 0 : index
      %c0_25 = arith.constant 0 : index
      %31 = vector.load %arg6[%c0_24, %c0_25] : memref<8x1xf32, #tpu.memory_space<vmem>>, vector<8x1xf32>
      tpu.vector_store %arg6[%c0_24, %c0_25], %30 {strides = array<i32>} : memref<8x1xf32, #tpu.memory_space<vmem>>, vector<8x1xf32>,
      %cst_26 = arith.constant 0.000000e+00 : f32
      %32 = vector.broadcast %cst_26 : f32 to vector<8x1xf32>
      %c0_27 = arith.constant 0 : index
      %c0_28 = arith.constant 0 : index
      %33 = vector.load %arg7[%c0_27, %c0_28] : memref<8x1xf32, #tpu.memory_space<vmem>>, vector<8x1xf32>
      tpu.vector_store %arg7[%c0_27, %c0_28], %32 {strides = array<i32>} : memref<8x1xf32, #tpu.memory_space<vmem>>, vector<8x1xf32>,
      %cst_29 = arith.constant 0.000000e+00 : f32
      %34 = vector.broadcast %cst_29 : f32 to vector<8x1xf32>
      %c0_30 = arith.constant 0 : index
      %c0_31 = arith.constant 0 : index
      %35 = vector.load %arg8[%c0_30, %c0_31] : memref<8x1xf32, #tpu.memory_space<vmem>>, vector<8x1xf32>
      tpu.vector_store %arg8[%c0_30, %c0_31], %34 {strides = array<i32>} : memref<8x1xf32, #tpu.memory_space<vmem>>, vector<8x1xf32>,
    } else {
    }
    %c0 = arith.constant 0 : index
    %c0_2 = arith.constant 0 : index
    %c0_3 = arith.constant 0 : index
    %5 = vector.load %arg3[%c0, %c0_2, %c0_3] : memref<1x8x128xf32, #tpu.memory_space<vmem>>, vector<1x8x128xf32>
    %6 = vector.shape_cast %5 : vector<1x8x128xf32> to vector<8x128xf32>
    %c0_4 = arith.constant 0 : index
    %c0_5 = arith.constant 0 : index
    %c0_6 = arith.constant 0 : index
    %7 = vector.load %arg4[%c0_4, %c0_5, %c0_6] : memref<1x8x128xf32, #tpu.memory_space<vmem>>, vector<1x8x128xf32>
    %8 = vector.shape_cast %7 : vector<1x8x128xf32> to vector<8x128xf32>
    %c0_7 = arith.constant 0 : index
    %c0_8 = arith.constant 0 : index
    %9 = vector.load %arg6[%c0_7, %c0_8] : memref<8x1xf32, #tpu.memory_space<vmem>>, vector<8x1xf32>
    %10 = arith.mulf %6, %8 : vector<8x128xf32>
    %cst = arith.constant dense<0.000000e+00> : vector<8xf32>
    %11 = vector.multi_reduction <add>, %10, %cst [1] : vector<8x128xf32> to vector<8xf32>
    %12 = vector.shape_cast %11 : vector<8xf32> to vector<8x1xf32>
    %13 = arith.addf %9, %12 : vector<8x1xf32>
    %c0_9 = arith.constant 0 : index
    %c0_10 = arith.constant 0 : index
    %14 = vector.load %arg6[%c0_9, %c0_10] : memref<8x1xf32, #tpu.memory_space<vmem>>, vector<8x1xf32>
    tpu.vector_store %arg6[%c0_9, %c0_10], %13 {strides = array<i32>} : memref<8x1xf32, #tpu.memory_space<vmem>>, vector<8x1xf32>,
    %c0_11 = arith.constant 0 : index
    %c0_12 = arith.constant 0 : index
    %15 = vector.load %arg7[%c0_11, %c0_12] : memref<8x1xf32, #tpu.memory_space<vmem>>, vector<8x1xf32>
    %cst_13 = arith.constant dense<0.000000e+00> : vector<8xf32>
    %16 = vector.multi_reduction <add>, %6, %cst_13 [1] : vector<8x128xf32> to vector<8xf32>
    %17 = vector.shape_cast %16 : vector<8xf32> to vector<8x1xf32>
    %18 = arith.addf %15, %17 : vector<8x1xf32>
    %c0_14 = arith.constant 0 : index
    %c0_15 = arith.constant 0 : index
    %19 = vector.load %arg7[%c0_14, %c0_15] : memref<8x1xf32, #tpu.memory_space<vmem>>, vector<8x1xf32>
    tpu.vector_store %arg7[%c0_14, %c0_15], %18 {strides = array<i32>} : memref<8x1xf32, #tpu.memory_space<vmem>>, vector<8x1xf32>,
    %c0_16 = arith.constant 0 : index
    %c0_17 = arith.constant 0 : index
    %20 = vector.load %arg8[%c0_16, %c0_17] : memref<8x1xf32, #tpu.memory_space<vmem>>, vector<8x1xf32>
    %cst_18 = arith.constant dense<0.000000e+00> : vector<8xf32>
    %21 = vector.multi_reduction <add>, %8, %cst_18 [1] : vector<8x128xf32> to vector<8xf32>
    %22 = vector.shape_cast %21 : vector<8xf32> to vector<8x1xf32>
    %23 = arith.addf %20, %22 : vector<8x1xf32>
    %c0_19 = arith.constant 0 : index
    %c0_20 = arith.constant 0 : index
    %24 = vector.load %arg8[%c0_19, %c0_20] : memref<8x1xf32, #tpu.memory_space<vmem>>, vector<8x1xf32>
    tpu.vector_store %arg8[%c0_19, %c0_20], %23 {strides = array<i32>} : memref<8x1xf32, #tpu.memory_space<vmem>>, vector<8x1xf32>,
    %c1_i32 = arith.constant 1 : i32
    %25 = arith.cmpi eq, %arg1, %c1_i32 : i32
    %c0_i32_21 = arith.constant 0 : i32
    %26 = arith.cmpi eq, %arg2, %c0_i32_21 : i32
    %27 = arith.andi %25, %26 : i1
    %28 = arith.extui %27 : i1 to i32
    %c0_i32_22 = arith.constant 0 : i32
    %29 = arith.cmpi ne, %28, %c0_i32_22 : i32
    scf.if %29 {
      %c0_23 = arith.constant 0 : index
      %c0_24 = arith.constant 0 : index
      %30 = vector.load %arg6[%c0_23, %c0_24] : memref<8x1xf32, #tpu.memory_space<vmem>>, vector<8x1xf32>
      %c0_25 = arith.constant 0 : index
      %c0_26 = arith.constant 0 : index
      %c0_27 = arith.constant 0 : index
      %31 = vector.load %arg5[%c0_25, %c0_26, %c0_27] : memref<1x8x3xf32, #tpu.memory_space<vmem>>, vector<1x8x1xf32>
      %32 = vector.shape_cast %31 : vector<1x8x1xf32> to vector<8x1xf32>
      %33 = vector.shape_cast %30 : vector<8x1xf32> to vector<1x8x1xf32>
      tpu.vector_store %arg5[%c0_25, %c0_26, %c0_27], %33 {strides = array<i32>} : memref<1x8x3xf32, #tpu.memory_space<vmem>>, vector<1x8x1xf32>,
      %c0_28 = arith.constant 0 : index
      %c0_29 = arith.constant 0 : index
      %34 = vector.load %arg7[%c0_28, %c0_29] : memref<8x1xf32, #tpu.memory_space<vmem>>, vector<8x1xf32>
      %c0_30 = arith.constant 0 : index
      %c0_31 = arith.constant 0 : index
      %c1 = arith.constant 1 : index
      %35 = vector.load %arg5[%c0_30, %c0_31, %c1] : memref<1x8x3xf32, #tpu.memory_space<vmem>>, vector<1x8x1xf32>
      %36 = vector.shape_cast %35 : vector<1x8x1xf32> to vector<8x1xf32>
      %37 = vector.shape_cast %34 : vector<8x1xf32> to vector<1x8x1xf32>
      tpu.vector_store %arg5[%c0_30, %c0_31, %c1], %37 {strides = array<i32>} : memref<1x8x3xf32, #tpu.memory_space<vmem>>, vector<1x8x1xf32>,
      %c0_32 = arith.constant 0 : index
      %c0_33 = arith.constant 0 : index
      %38 = vector.load %arg8[%c0_32, %c0_33] : memref<8x1xf32, #tpu.memory_space<vmem>>, vector<8x1xf32>
      %c0_34 = arith.constant 0 : index
      %c0_35 = arith.constant 0 : index
      %c2 = arith.constant 2 : index
      %39 = vector.load %arg5[%c0_34, %c0_35, %c2] : memref<1x8x3xf32, #tpu.memory_space<vmem>>, vector<1x8x1xf32>
      %40 = vector.shape_cast %39 : vector<1x8x1xf32> to vector<8x1xf32>
      %41 = vector.shape_cast %38 : vector<8x1xf32> to vector<1x8x1xf32>
      tpu.vector_store %arg5[%c0_34, %c0_35, %c2], %41 {strides = array<i32>} : memref<1x8x3xf32, #tpu.memory_space<vmem>>, vector<1x8x1xf32>,
    } else {
    }
    return
  }
  func.func @transform_0(%arg0: i32, %arg1: i32, %arg2: i32) -> (i32, i32, i32) {
    %c1_i32 = arith.constant 1 : i32
    %0 = arith.muli %arg0, %c1_i32 : i32
    %1 = arith.addi %0, %arg2 : i32
    %c0_i32 = arith.constant 0 : i32
    %2 = arith.minsi %1, %c0_i32 : i32
    %c0_i32_0 = arith.constant 0 : i32
    %c0_i32_1 = arith.constant 0 : i32
    return %arg1, %c0_i32_0, %2 : i32, i32, i32
  }
  func.func @transform_1(%arg0: i32, %arg1: i32, %arg2: i32) -> (i32, i32, i32) {
    %c1_i32 = arith.constant 1 : i32
    %0 = arith.muli %arg0, %c1_i32 : i32
    %1 = arith.addi %0, %arg2 : i32
    %c0_i32 = arith.constant 0 : i32
    %2 = arith.minsi %1, %c0_i32 : i32
    %c0_i32_0 = arith.constant 0 : i32
    %c0_i32_1 = arith.constant 0 : i32
    return %arg1, %c0_i32_0, %2 : i32, i32, i32
  }
  func.func @transform_2(%arg0: i32, %arg1: i32, %arg2: i32) -> (i32, i32, i32) {
    %c0_i32 = arith.constant 0 : i32
    %c0_i32_0 = arith.constant 0 : i32
    %c0_i32_1 = arith.constant 0 : i32
    return %arg0, %c0_i32, %c0_i32_0 : i32, i32, i32
  }
}

</mosaic_0001>

<llo_original>
// kernel: tpu_custom_call.1
$region0: #{tpu_custom_call.1}
  #allocation0 [shape = 'u32[]', space=smem, size = 0x4, offset = 0x4, fixed_abs, tag = 'smem constant byte address 0x4 - core index']
  #allocation1 [shape = 'u32[144,128]{1,0:T(1,128)}', space=vmem, size = 0x12000, scoped, tag = 'internal scratch']
  #allocation2 [shape = 'f32[8,1]{1,0:T(8,128)}', space=vmem, size = 0x1000, scoped, tag = 'scratch operand']
  #allocation3 [shape = 'f32[8,1]{1,0:T(8,128)}', space=vmem, size = 0x1000, scoped, tag = 'scratch operand']
  #allocation4 [shape = 'f32[8,1]{1,0:T(8,128)}', space=vmem, size = 0x1000, scoped, tag = 'scratch operand']
  %s0 = inlined_call_operand.hbm [shape: f32[2,8,128], index: 0, kind: input, shape index: {}]
  %s1 = inlined_call_operand.hbm [shape: f32[2,8,128], index: 1, kind: input, shape index: {}]
  %s2 = inlined_call_operand.vmem [shape: f32[1,8,3], index: 2, kind: output, shape index: {}]
  %s3 = sld [smem:[#allocation0]]
  $region57: #{tpu_custom_call.1} parent=0
    _
  %s5 = ssub.s32 1, %s3
  %s6 = scalar_select 0, %s5, %s3
  $region1: #{tpu_custom_call.1} parent=0
    #allocation5 [shape = 'u8[8192]{0}', space=vmem, size = 0x2000, scoped, tag = 'input window, operand 0']
    #allocation6 [shape = 's32[2]{0}', space=sflag, size = 0x8, scoped, tag = 'scoped memory for tpu_custom_call.1']
    #allocation7 [shape = 'u8[8192]{0}', space=vmem, size = 0x2000, scoped, tag = 'input window, operand 1']
    #allocation8 [shape = 's32[2]{0}', space=sflag, size = 0x8, scoped, tag = 'scoped memory for tpu_custom_call.1']
    %7 = vsyncpa [#allocation6], 0
    %s8 = scalar_lea.sflag [#allocation6], 1
    %9 = vsyncpa %s8, 0
    %10 = vsyncpa [#allocation8], 0
    %s11 = scalar_lea.sflag [#allocation8], 1
    %12 = vsyncpa %s11, 0
    loop: start=0, step=1, limit=4
    $region2: #{tpu_custom_call.1} parent=1 // loop_pre_header
      _
    $region3: #{tpu_custom_call.1} parent=1 // loop_header
      %s14 = sphi 0, %s18
      %p15 = scmp.ge.s32.totalorder %s14, 4
      %s21 = sphi 0, %s40
      %s22 = sphi 0, %s36
      %s23 = sphi 0, %s32
      %s24 = sphi 0, %s21
      %s25 = sphi 0, %s22
      %s26 = sphi 0, %s23
      %s27 = sphi 0, %s24
      %s28 = sphi 0, %s25
      %s29 = sphi 0, %s26
      %s51 = sphi 0, %s53
      %s54 = sphi 0, %s51
      %s55 = sphi 0, %s54
      %s71 = sphi 0, %s55
      %s85 = sphi 0, %s87
      %s88 = sphi 0, %s85
      %s89 = sphi 0, %s88
      %s105 = sphi 0, %s89
      %s111 = sphi 0, %s113
      %s114 = sphi 0, %s111
      %s115 = sphi 0, %s114
      %s131 = sphi 0, %s115
    $region4: #{tpu_custom_call.1} parent=1 // loop_header_branch
      %17 = sbr.rel (%p15) target = $region8
    $region5: #{tpu_custom_call.1} parent=1 // loop_body
      %s19 = ssub.s32 %s14, 1
      %s20 = ssub.s32 %s14, 2
      %s30 = sadd.s32 1, %s23
      %p31 = scmp.ge.s32.totalorder %s30, 1
      %s32 = scalar_select %p31, 0, %s30
      %s33 = sadd.s32 1, %s22
      %s34 = scalar_select %p31, %s33, %s22
      %p35 = scmp.ge.s32.totalorder %s34, 2
      %s36 = scalar_select %p35, 0, %s34
      %s37 = sadd.s32 1, %s21
      %s38 = scalar_select %p35, %s37, %s21
      %p39 = scmp.ge.s32.totalorder %s38, 1
      %s40 = scalar_select %p39, 0, %s38
      %s41 = sadd.s32 %s21, %s23
      %p42 = scmp.lt.s32.totalorder %s41, 0
      %s43 = scalar_select %p42, %s41, 0
      %s44 = sadd.s32 %s40, %s32
      %p45 = scmp.lt.s32.totalorder %s44, 0
      %s46 = scalar_select %p45, %s44, 0
      %s47 = ssub.s32 %s22, %s36
      %s48 = ssub.s32 %s43, %s46
      %s49 = sor.u32 %s47, %s48
      %p50 = scmp.eq.s32.totalorder %s49, 0
      %s52 = sadd.s32 %s51, 1
      %s53 = scalar_select %p50, %s51, %s52
      %p56 = pneg %p50
      %p57 = scmp.eq.s32.totalorder %s14, 1
      %p58 = por %p56, %p57
      %p59 = scmp.ne.s32.totalorder %s51, %s54
      %p60 = scmp.eq.s32.totalorder %s14, 0
      %p61 = por %p59, %p60
      %p62 = scmp.ne.s32.totalorder %s51, %s54
      %p63 = scmp.eq.s32.totalorder %s19, 1
      %p64 = por %p62, %p63
      %p65 = scmp.ne.s32.totalorder %s54, %s55
      %p66 = scmp.eq.s32.totalorder %s19, 0
      %p67 = por %p65, %p66
      %p68 = scmp.ne.s32.totalorder %s54, %s55
      %p69 = scmp.eq.s32.totalorder %s20, 1
      %p70 = por %p68, %p69
      %p72 = scmp.ne.s32.totalorder %s55, %s71
      %p73 = scmp.eq.s32.totalorder %s20, 0
      %p74 = por %p72, %p73
      %s75 = sadd.s32 %s21, %s23
      %p76 = scmp.lt.s32.totalorder %s75, 0
      %s77 = scalar_select %p76, %s75, 0
      %s78 = sadd.s32 %s40, %s32
      %p79 = scmp.lt.s32.totalorder %s78, 0
      %s80 = scalar_select %p79, %s78, 0
      %s81 = ssub.s32 %s22, %s36
      %s82 = ssub.s32 %s77, %s80
      %s83 = sor.u32 %s81, %s82
      %p84 = scmp.eq.s32.totalorder %s83, 0
      %s86 = sadd.s32 %s85, 1
      %s87 = scalar_select %p84, %s85, %s86
      %p90 = pneg %p84
      %p91 = scmp.eq.s32.totalorder %s14, 1
      %p92 = por %p90, %p91
      %p93 = scmp.ne.s32.totalorder %s85, %s88
      %p94 = scmp.eq.s32.totalorder %s14, 0
      %p95 = por %p93, %p94
      %p96 = scmp.ne.s32.totalorder %s85, %s88
      %p97 = scmp.eq.s32.totalorder %s19, 1
      %p98 = por %p96, %p97
      %p99 = scmp.ne.s32.totalorder %s88, %s89
      %p100 = scmp.eq.s32.totalorder %s19, 0
      %p101 = por %p99, %p100
      %p102 = scmp.ne.s32.totalorder %s88, %s89
      %p103 = scmp.eq.s32.totalorder %s20, 1
      %p104 = por %p102, %p103
      %p106 = scmp.ne.s32.totalorder %s89, %s105
      %p107 = scmp.eq.s32.totalorder %s20, 0
      %p108 = por %p106, %p107
      %s109 = ssub.s32 %s21, %s40
      %p110 = scmp.eq.s32.totalorder %s109, 0
      %s112 = sadd.s32 %s111, 1
      %s113 = scalar_select %p110, %s111, %s112
      %p116 = pneg %p110
      %p117 = scmp.eq.s32.totalorder %s14, 1
      %p118 = por %p116, %p117
      %p119 = scmp.ne.s32.totalorder %s111, %s114
      %p120 = scmp.eq.s32.totalorder %s14, 0
      %p121 = por %p119, %p120
      %p122 = scmp.ne.s32.totalorder %s111, %s114
      %p123 = scmp.eq.s32.totalorder %s19, 1
      %p124 = por %p122, %p123
      %p125 = scmp.ne.s32.totalorder %s114, %s115
      %p126 = scmp.eq.s32.totalorder %s19, 0
      %p127 = por %p125, %p126
      %p128 = scmp.ne.s32.totalorder %s114, %s115
      %p129 = scmp.eq.s32.totalorder %s20, 1
      %p130 = por %p128, %p129
      %p132 = scmp.ne.s32.totalorder %s115, %s131
      %p133 = scmp.eq.s32.totalorder %s20, 0
      %p134 = por %p132, %p133
      %p135 = scmp.le.s32.totalorder 1, %s14
      %p136 = scmp.lt.s32.totalorder %s14, 3
      %p137 = pnand %p135, %p136
      %p138 = pneg %p137
      // Predicated region
      $region9: #{tpu_custom_call.1} parent=5 // pred_check
        _
      $region10: #{tpu_custom_call.1} parent=5 // pred_check_branch
        %140 = sbr.rel (%p137) target = $region12
      $region11: #{tpu_custom_call.1} parent=5 // pred_region
        %s141 = ssub.s32 %s14, 1
      $region12: #{tpu_custom_call.1} parent=5 // pred_fallthru
        _
      %p142 = scmp.lt.s32.totalorder %s14, 2
      // Predicated region
      $region13: #{tpu_custom_call.1} parent=5 // pred_check
        %p143 = pneg %p142
      $region14: #{tpu_custom_call.1} parent=5 // pred_check_branch
        %145 = sbr.rel (%p143) target = $region16
      $region15: #{tpu_custom_call.1} parent=5 // pred_region
        // Predicated region
        $region17: #{tpu_custom_call.1} parent=15 // pred_check
          %p146 = pneg %p61
        $region18: #{tpu_custom_call.1} parent=15 // pred_check_branch
          %148 = sbr.rel (%p146) target = $region20
        $region19: #{tpu_custom_call.1} parent=15 // pred_region
          %s149 = sand.u32 %s51, 1
          %s150 = scalar_lea.sflag [#allocation6], %s149
          %s151 = sand.u32 %s51, 1
          %s152 = smul.addr %s151, 8
          %s153 = scalar_lea.vmem [#allocation5], %s152
          %s154 = sadd.s32 %s21, %s23
          %p155 = scmp.lt.s32.totalorder %s154, 0
          %s156 = scalar_select %p155, %s154, 0
          %s158 = ssub.s32 128, 128
          %159 = vsyncadd %s150, %s158
          %s160 = sadd.s32 %s156, %s22
          %s161 = smul.addr %s160, 128
          %s162 = scalar_lea.hbm %s0, %s161
          %s164 = sshll.u32 %s153, 4
          %s165 = int_to_ptr.vmem [resolvable:$true] %s164
          %167 = dma.hbm_to_vmem [thread:$0]  %s162, 128, %s165, %s150
        $region20: #{tpu_custom_call.1} parent=15 // pred_fallthru
          _
        // Predicated region
        $region21: #{tpu_custom_call.1} parent=15 // pred_check
          %p168 = pneg %p95
        $region22: #{tpu_custom_call.1} parent=15 // pred_check_branch
          %170 = sbr.rel (%p168) target = $region24
        $region23: #{tpu_custom_call.1} parent=15 // pred_region
          %s171 = sand.u32 %s85, 1
          %s172 = scalar_lea.sflag [#allocation8], %s171
          %s173 = sand.u32 %s85, 1
          %s174 = smul.addr %s173, 8
          %s175 = scalar_lea.vmem [#allocation7], %s174
          %s176 = sadd.s32 %s21, %s23
          %p177 = scmp.lt.s32.totalorder %s176, 0
          %s178 = scalar_select %p177, %s176, 0
          %s180 = ssub.s32 128, 128
          %181 = vsyncadd %s172, %s180
          %s182 = sadd.s32 %s178, %s22
          %s183 = smul.addr %s182, 128
          %s184 = scalar_lea.hbm %s1, %s183
          %s186 = sshll.u32 %s175, 4
          %s187 = int_to_ptr.vmem [resolvable:$true] %s186
          %189 = dma.hbm_to_vmem [thread:$0]  %s184, 128, %s187, %s172
        $region24: #{tpu_custom_call.1} parent=15 // pred_fallthru
          _
      $region16: #{tpu_custom_call.1} parent=5 // pred_fallthru
        _
      %p190 = scmp.le.s32.totalorder 1, %s14
      %p191 = scmp.lt.s32.totalorder %s14, 3
      %p192 = pnand %p190, %p191
      %p193 = pneg %p192
      // Predicated region
      $region25: #{tpu_custom_call.1} parent=5 // pred_check
        _
      $region26: #{tpu_custom_call.1} parent=5 // pred_check_branch
        %195 = sbr.rel (%p192) target = $region28
      $region27: #{tpu_custom_call.1} parent=5 // pred_region
        %s196 = ssub.s32 %s14, 1
        %s197 = sand.u32 %s54, 1
        %s198 = scalar_lea.sflag [#allocation6], %s197
        %s199 = sand.u32 %s54, 1
        %s200 = smul.addr %s199, 8
        %s201 = scalar_lea.vmem [#allocation5], %s200
        // Predicated region
        $region29: #{tpu_custom_call.1} parent=27 // pred_check
          %p202 = pneg %p67
        $region30: #{tpu_custom_call.1} parent=27 // pred_check_branch
          %204 = sbr.rel (%p202) target = $region32
        $region31: #{tpu_custom_call.1} parent=27 // pred_region
          %205 = dma.done %s198, 128
        $region32: #{tpu_custom_call.1} parent=27 // pred_fallthru
          _
        %s206 = sand.u32 %s88, 1
        %s207 = scalar_lea.sflag [#allocation8], %s206
        %s208 = sand.u32 %s88, 1
        %s209 = smul.addr %s208, 8
        %s210 = scalar_lea.vmem [#allocation7], %s209
        // Predicated region
        $region33: #{tpu_custom_call.1} parent=27 // pred_check
          %p211 = pneg %p101
        $region34: #{tpu_custom_call.1} parent=27 // pred_check_branch
          %213 = sbr.rel (%p211) target = $region36
        $region35: #{tpu_custom_call.1} parent=27 // pred_region
          %214 = dma.done %s207, 128
        $region36: #{tpu_custom_call.1} parent=27 // pred_fallthru
          _
        %s215 = sand.u32 %s54, 1
        %s216 = scalar_lea.sflag [#allocation6], %s215
        %s217 = sand.u32 %s54, 1
        %s218 = smul.addr %s217, 8
        %s219 = scalar_lea.vmem [#allocation5], %s218
        %p220 = pneg %p67
        %p221 = pneg %p64
        %s222 = sand.u32 %s88, 1
        %s223 = scalar_lea.sflag [#allocation8], %s222
        %s224 = sand.u32 %s88, 1
        %s225 = smul.addr %s224, 8
        %s226 = scalar_lea.vmem [#allocation7], %s225
        %p227 = pneg %p101
        %p228 = pneg %p98
        %p229 = pneg %p127
        %p230 = pneg %p124
        %p231 = scmp.lt.s32.totalorder %s24, 0
        %s232 = scalar_select %p231, %s24, 0
        %s233 = smul.addr %s232, 8
        %s234 = scalar_lea.vmem %s2, %s233
        %s235 = sadd.s32 %s24, %s26
        %p236 = scmp.lt.s32.totalorder %s235, 0
        %s237 = scalar_select %p236, %s235, 0
        %s238 = sadd.s32 %s24, %s26
        %p239 = scmp.lt.s32.totalorder %s238, 0
        %s240 = scalar_select %p239, %s238, 0
        %p241 = scmp.lt.s32.totalorder %s24, 0
        %s242 = scalar_select %p241, %s24, 0
        %s243 = smul.addr %s242, 8
        %s244 = scalar_lea.vmem %s2, %s243
        %p245 = scmp.eq.s32.totalorder %s25, 0
        %p246 = scmp.eq.s32.totalorder %s26, 0
        %p247 = pnand %p245, %p246
        %p248 = pneg %p247
        // Predicated region
        $region37: #{tpu_custom_call.1} parent=27 // pred_check
          _
        $region38: #{tpu_custom_call.1} parent=27 // pred_check_branch
          %250 = sbr.rel (%p247) target = $region40
        $region39: #{tpu_custom_call.1} parent=27 // pred_region
          %vm251 = vcmask 7168
          %252 = vst.msk [vmem:[#allocation2] sm:$0xff] %vm251, 0.0
          %253 = vst.msk [vmem:[#allocation3] sm:$0xff] %vm251, 0.0
          %254 = vst.msk [vmem:[#allocation4] sm:$0xff] %vm251, 0.0
        $region40: #{tpu_custom_call.1} parent=27 // pred_fallthru
          _
        %v255 = vld [vmem:[%s201] sm:$0xff]
        %v256 = vld [vmem:[%s210] sm:$0xff]
        %v257 = vld [vmem:[#allocation2] sm:$0xff]
        %v258 = vmul.f32 %v255, %v256
        %259 = vadd.xlane.f32.xlu0 %v258
        %v260 = vpop.xlane.xlu0 %259
        %v261 = vadd.f32 %v257, %v260
        %vm262 = vcmask 7168
        %263 = vst.msk [vmem:[#allocation2] sm:$0xff] %vm262, %v261
        %v264 = vld [vmem:[#allocation3] sm:$0xff]
        %265 = vadd.xlane.f32.xlu0 %v255
        %v266 = vpop.xlane.xlu0 %265
        %v267 = vadd.f32 %v264, %v266
        %268 = vst.msk [vmem:[#allocation3] sm:$0xff] %vm262, %v267
        %v269 = vld [vmem:[#allocation4] sm:$0xff]
        %270 = vadd.xlane.f32.xlu0 %v256
        %v271 = vpop.xlane.xlu0 %270
        %v272 = vadd.f32 %v269, %v271
        %273 = vst.msk [vmem:[#allocation4] sm:$0xff] %vm262, %v272
        %p274 = scmp.eq.s32.totalorder %s25, 1
        %p275 = pnand %p274, %p246
        %p276 = pneg %p275
        // Predicated region
        $region41: #{tpu_custom_call.1} parent=27 // pred_check
          _
        $region42: #{tpu_custom_call.1} parent=27 // pred_check_branch
          %278 = sbr.rel (%p275) target = $region44
        $region43: #{tpu_custom_call.1} parent=27 // pred_region
          %v279 = vld [vmem:[#allocation2] sm:$0xff]
          %280 = vst.msk [vmem:[%s244] sm:$0xff] %vm262, %v279
          %v281 = vld [vmem:[#allocation3] sm:$0xff]
          %283 = vrot.lane.b32.xlu0 %v281, 1
          %v284 = vpop.permute.xlu0 %283
          %vm286 = vcmask 15368
          %287 = vst.msk [vmem:[%s244] sm:$0xff] %vm286, %v284
          %v288 = vld [vmem:[#allocation4] sm:$0xff]
          %290 = vrot.lane.b32.xlu0 %v288, 2
          %v291 = vpop.permute.xlu0 %290
          %vm293 = vcmask 23568
          %294 = vst.msk [vmem:[%s244] sm:$0xff] %vm293, %v291
        $region44: #{tpu_custom_call.1} parent=27 // pred_fallthru
          _
        %p295 = scmp.lt.s32.totalorder %s24, 0
        %s296 = scalar_select %p295, %s24, 0
        %s297 = smul.addr %s296, 8
        %s298 = scalar_lea.vmem %s2, %s297
        // Predicated region
        $region45: #{tpu_custom_call.1} parent=27 // pred_check
          %p299 = pneg %p124
        $region46: #{tpu_custom_call.1} parent=27 // pred_check_branch
          %301 = sbr.rel (%p299) target = $region48
        $region47: #{tpu_custom_call.1} parent=27 // pred_region
          _
        $region48: #{tpu_custom_call.1} parent=27 // pred_fallthru
          _
        // Predicated region
        $region49: #{tpu_custom_call.1} parent=27 // pred_check
          %p302 = pneg %p124
        $region50: #{tpu_custom_call.1} parent=27 // pred_check_branch
          %304 = sbr.rel (%p302) target = $region52
        $region51: #{tpu_custom_call.1} parent=27 // pred_region
          %p305 = scmp.lt.s32.totalorder %s24, 0
          %s306 = scalar_select %p305, %s24, 0
          %s307 = smul.addr %s306, 8
          %s308 = scalar_lea.vmem %s2, %s307
        $region52: #{tpu_custom_call.1} parent=27 // pred_fallthru
          _
      $region28: #{tpu_custom_call.1} parent=5 // pred_fallthru
        _
      %p309 = scmp.le.s32.totalorder 2, %s14
      // Predicated region
      $region53: #{tpu_custom_call.1} parent=5 // pred_check
        %p310 = pneg %p309
      $region54: #{tpu_custom_call.1} parent=5 // pred_check_branch
        %312 = sbr.rel (%p310) target = $region56
      $region55: #{tpu_custom_call.1} parent=5 // pred_region
        %s313 = ssub.s32 %s14, 2
      $region56: #{tpu_custom_call.1} parent=5 // pred_fallthru
        _
    $region6: #{tpu_custom_call.1} parent=1 // loop_footer
      %s18 = sadd.s32 1, %s14
    $region7: #{tpu_custom_call.1} parent=1 // loop_footer_branch
      %13 = sbr.rel target = $region3
    $region8: #{tpu_custom_call.1} parent=1 // loop_exit
      _
    %314 = vsyncpa [#allocation6], 1
    %s315 = scalar_lea.sflag [#allocation6], 1
    %316 = vsyncpa %s315, 1
    %317 = vsyncpa [#allocation8], 1
    %s318 = scalar_lea.sflag [#allocation8], 1
    %319 = vsyncpa %s318, 1

</llo_original>
